<compile_context>
chip_gen: v7x
topology: tpu7x:2x2x1
jax: 0.10.0
libtpu: 0.0.40
codegen_flags: <defaults>
</compile_context>

<pallas_src>
import functools

import jax
import jax.numpy as jnp
from jax import lax
from jax.experimental import pallas as pl
from jax.experimental.pallas import tpu as pltpu

_LANE = 128      # vreg lane width
_SUBLANE = 8     # vreg sublane height


def _round_up(n, m):
    return (n + m - 1) // m * m


def _relu_cube(h):
    # max(h**3, 0) == (max(h, 0))**3 : clamp first, then two VPU muls.
    r = jnp.maximum(h, 0.0)
    return r * r * r


def prepare_params(w1, b1, w2, b2, *, weight_dtype=jnp.bfloat16, lane_multiple=_LANE):
    """One-time weight preparation (call once, reuse across recurrent_block calls).

    Pads hidden to a multiple of `lane_multiple` (128; pass 256 on v6e/v7x when H is
    just above a 128 boundary to fill both MXU halves), transposes PyTorch (out, in)
    weights to (in, out) for a standard (K, N) contraction, and casts to bf16 once so
    the kernel never re-casts and weight HBM->VMEM DMA bytes are halved.
    Zero padding keeps padded lanes exactly zero through both linears (zero weight
    rows/cols, zero bias, relu_cube(0)=0) and the residual, so the final slice is exact.
    """
    H = w1.shape[0]
    Hp = _round_up(H, lane_multiple)

    def prep_w(w):
        return jnp.pad(w, ((0, Hp - H), (0, Hp - H))).T.astype(weight_dtype)

    def prep_b(b):
        return jnp.pad(b, (0, Hp - H)).reshape(1, Hp).astype(jnp.float32)

    return prep_w(w1), prep_b(b1), prep_w(w2), prep_b(b2)


def _make_kernel(steps):
    def kernel(x_ref, w1_ref, b1_ref, w2_ref, b2_ref, o_ref):
        # Weights: (Hp, Hp), (in, out) layout, already in their compute dtype.
        w1 = w1_ref[...]
        w2 = w2_ref[...]
        # Hoist bias loads + broadcasts out of the steps loop (JAX doesn't CSE
        # broadcast_in_dim, so doing this per step re-materializes it).
        b1 = jnp.broadcast_to(b1_ref[...], x_ref.shape)
        b2 = jnp.broadcast_to(b2_ref[...], x_ref.shape)

        def block(x):
            h = jnp.dot(x.astype(w1.dtype), w1, preferred_element_type=jnp.float32)
            h = _relu_cube(h + b1)                 # fp32 epilogue
            h = jnp.dot(h.astype(w2.dtype), w2, preferred_element_type=jnp.float32)
            h = _relu_cube(h + b2)
            return h + x                           # residual in fp32

        x = x_ref[...].astype(jnp.float32)         # (tm, Hp) fp32 state
        if steps == 1:
            x = block(x)
        else:
            # fori_loop (not a Python for) so live ranges are bounded; unrolled for
            # LLO scheduler visibility (steps is expected to be small).
            x = lax.fori_loop(0, steps, lambda _, s: block(s), x, unroll=True)
        o_ref[...] = x.astype(o_ref.dtype)

    return kernel


def _choose_tile(B, Hp, block_batch):
    """Pick the batch tile (tm) and padded batch (Bp)."""
    if block_batch is not None:
        tm = _round_up(max(int(block_batch), _SUBLANE), _SUBLANE)
        return tm, _round_up(B, tm)
    # Big tile amortizes MXU fill and per-grid-step overhead; cap so the fp32 x/out
    # double buffers (2 arrays * 2 buffers * tm*Hp*4 bytes) stay ~<= 16 MiB.
    cap = max(_SUBLANE, ((1 << 20) // Hp) // _SUBLANE * _SUBLANE)
    tm = min(256, cap, _round_up(B, _SUBLANE))
    # Megacore (v7x): keep at least 2 grid steps when the batch is big enough to split,
    # otherwise the single-step grid leaves one TensorCore idle.
    if B >= 2 * _SUBLANE and _round_up(B, tm) // tm < 2:
        tm = _round_up(pl.cdiv(B, 2), _SUBLANE)
    return tm, _round_up(B, tm)


@functools.partial(
    jax.jit, static_argnames=("tm", "Bp", "steps", "single_buffer_weights"))
def _forward(x, w1p, b1p, w2p, b2p, *, tm, Bp, steps, single_buffer_weights):
    B, H = x.shape
    Hp = w1p.shape[0]
    # Lane-dense padded activations: every store is an unmasked vst.
    xp = jnp.pad(x, ((0, Bp - B), (0, Hp - H)))

    # Constant operands: single-buffer them (their index_map never changes, so a
    # second pipeline buffer is pure VMEM waste — matters for large Hp on v7x/v5e).
    wkw = dict(pipeline_mode=pl.Buffered(1)) if single_buffer_weights else {}
    w_spec = pl.BlockSpec((Hp, Hp), lambda i: (0, 0), **wkw)
    b_spec = pl.BlockSpec((1, Hp), lambda i: (0, 0), **wkw)

    # Explicit VMEM budget: weights (+biases) * buffer count + fp32 x/out double buffers.
    wsize = w1p.dtype.itemsize
    n_wbuf = 1 if single_buffer_weights else 2
    weight_vmem = n_wbuf * 2 * (Hp * Hp * wsize + Hp * 4)
    act_vmem = 2 * 2 * tm * Hp * 4
    vmem_limit = int(min(128 << 20, max(32 << 20, (weight_vmem + act_vmem) * 5 // 4)))

    cost = pl.CostEstimate(
        flops=4 * steps * Bp * Hp * Hp,            # two (tm,Hp)x(Hp,Hp) matmuls / step
        transcendentals=0,
        bytes_accessed=2 * Bp * Hp * 4 + 2 * (Hp * Hp * wsize + Hp * 4),
    )

    # TODO(synk): for Hp where the bf16 weights exceed ~half of v7x's 64 MiB VMEM,
    # tile the fc1-out / fc2-in dims with a pl.when-initialized fp32 accumulator (or
    # stream weight tiles via pltpu.emit_pipeline) instead of keeping both resident.
    out = pl.pallas_call(
        _make_kernel(steps),
        out_shape=jax.ShapeDtypeStruct((Bp, Hp), x.dtype),
        grid_spec=pltpu.PrefetchScalarGridSpec(
            num_scalar_prefetch=0,
            grid=(Bp // tm,),
            in_specs=[
                pl.BlockSpec((tm, Hp), lambda i: (i, 0)),   # x: batch-tiled
                w_spec,                                     # w1: VMEM-resident
                b_spec,                                     # b1
                w_spec,                                     # w2: VMEM-resident
                b_spec,                                     # b2
            ],
            out_specs=pl.BlockSpec((tm, Hp), lambda i: (i, 0)),
        ),
        compiler_params=pltpu.CompilerParams(
            dimension_semantics=("parallel",),              # shard batch tiles across TCs
            vmem_limit_bytes=vmem_limit,
        ),
        cost_estimate=cost,
        # Output reuses the padded-x HBM buffer.  INVARIANT: each (tm, Hp) tile is read
        # exactly once before its identical, disjoint output tile is written — do not
        # change the index_maps (e.g. weight-dim tiling with revisits) without removing
        # this alias.
        input_output_aliases={0: 0},
    )(xp, w1p, b1p, w2p, b2p)

    return out[:B, :H]


# None = unknown (probe on first call), then True/False.  Falls back cleanly if
# pipeline_mode=pl.Buffered(1) is not supported by the installed JAX/Mosaic.
_single_buffer_ok = None


def recurrent_block(x, params, *, block_batch=None, steps=1):
    """x: (B, H) fp32.  params: output of prepare_params().  Applies the block `steps`
    times (steps=1 == the PyTorch module forward)."""
    global _single_buffer_ok
    w1p, b1p, w2p, b2p = params
    B, H = x.shape
    Hp = w1p.shape[0]
    tm, Bp = _choose_tile(B, Hp, block_batch)
    kwargs = dict(tm=tm, Bp=Bp, steps=steps)
    if _single_buffer_ok is None:
        try:
            out = jax.block_until_ready(
                _forward(x, w1p, b1p, w2p, b2p, single_buffer_weights=True, **kwargs))
            _single_buffer_ok = True
            return out
        except Exception:
            _single_buffer_ok = False
    return _forward(x, w1p, b1p, w2p, b2p,
                    single_buffer_weights=_single_buffer_ok, **kwargs)


def recurrent_block_ref(x, w1, b1, w2, b2):
    # Pure fp32 reference matching PyTorch semantics exactly.
    h = jnp.maximum((x @ w1.T + b1) ** 3, 0.0)
    h = jnp.maximum((h @ w2.T + b2) ** 3, 0.0)
    return h + x


def recurrent_block_ref_bf16(x, w1, b1, w2, b2):
    # Reference using the kernel's matmul policy (bf16 operands in (in,out) layout,
    # fp32 accumulation, fp32 epilogue).
    def mm(a, w):
        return jnp.dot(a.astype(jnp.bfloat16), w.T.astype(jnp.bfloat16),
                       preferred_element_type=jnp.float32)

    h = jnp.maximum((mm(x, w1) + b1) ** 3, 0.0)
    h = jnp.maximum((mm(h, w2) + b2) ** 3, 0.0)
    return h + x


if __name__ == "__main__":
    hidden = 32
    batch = 32

    key = jax.random.PRNGKey(0)
    kx, kw1, kb1, kw2, kb2 = jax.random.split(key, 5)

    # PyTorch Linear default init: U(-1/sqrt(H), 1/sqrt(H))
    bound = 1.0 / jnp.sqrt(hidden)
    w1 = jax.random.uniform(kw1, (hidden, hidden), jnp.float32, -bound, bound)
    b1 = jax.random.uniform(kb1, (hidden,), jnp.float32, -bound, bound)
    w2 = jax.random.uniform(kw2, (hidden, hidden), jnp.float32, -bound, bound)
    b2 = jax.random.uniform(kb2, (hidden,), jnp.float32, -bound, bound)

    x = jax.random.normal(kx, (batch, hidden), jnp.float32)

    # One-time weight preparation (pad + transpose + bf16 cast), cached across calls.
    params = prepare_params(w1, b1, w2, b2)

    # Single application == module forward.
    out = jax.block_until_ready(recurrent_block(x, params))
    assert out.shape == (batch, hidden)

    ref_bf16 = recurrent_block_ref_bf16(x, w1, b1, w2, b2)
    assert jnp.allclose(out, ref_bf16, atol=1e-4, rtol=1e-4), float(
        jnp.max(jnp.abs(out - ref_bf16)))

    ref_f32 = recurrent_block_ref(x, w1, b1, w2, b2)
    assert jnp.allclose(out, ref_f32, atol=1e-1, rtol=1e-1)

    # Fused multi-step (recurrent) application: 3 block applications in one pallas_call.
    x_small = 0.05 * x
    out3 = jax.block_until_ready(recurrent_block(x_small, params, steps=3))
    ref3 = x_small
    for _ in range(3):
        ref3 = recurrent_block_ref_bf16(ref3, w1, b1, w2, b2)
    assert jnp.allclose(out3, ref3, atol=1e-4, rtol=1e-3)

    print("KERNEL_OK")
</pallas_src>

<mosaic_0001>
module attributes {stable_mosaic.version = 11 : i64} {
  func.func @kernel(%arg0: i32, %arg1: memref<16x128xf32, #tpu.memory_space<vmem>>, %arg2: memref<128x128xbf16, #tpu.memory_space<vmem>>, %arg3: memref<1x128xf32, #tpu.memory_space<vmem>>, %arg4: memref<128x128xbf16, #tpu.memory_space<vmem>>, %arg5: memref<1x128xf32, #tpu.memory_space<vmem>>, %arg6: memref<16x128xf32, #tpu.memory_space<vmem>>) attributes {dimension_semantics = [#tpu.dimension_semantics<parallel>], iteration_bounds = array<i64: 2>, scalar_prefetch = 0 : i64, scratch_operands = 0 : i64, tpu.core_type = #tpu.core_type<tc>, window_params = [{transform_indices = @transform_0, window_bounds = array<i64: 16, 128>}, {pipeline_mode = #tpu.pipeline_mode<synchronous>, transform_indices = @transform_1, window_bounds = array<i64: 128, 128>}, {pipeline_mode = #tpu.pipeline_mode<synchronous>, transform_indices = @transform_2, window_bounds = array<i64: 1, 128>}, {pipeline_mode = #tpu.pipeline_mode<synchronous>, transform_indices = @transform_3, window_bounds = array<i64: 128, 128>}, {pipeline_mode = #tpu.pipeline_mode<synchronous>, transform_indices = @transform_4, window_bounds = array<i64: 1, 128>}, {transform_indices = @transform_5, window_bounds = array<i64: 16, 128>}]} {
    %c0 = arith.constant 0 : index
    %c0_0 = arith.constant 0 : index
    %0 = vector.load %arg2[%c0, %c0_0] : memref<128x128xbf16, #tpu.memory_space<vmem>>, vector<128x128xbf16>
    %c0_1 = arith.constant 0 : index
    %c0_2 = arith.constant 0 : index
    %1 = vector.load %arg4[%c0_1, %c0_2] : memref<128x128xbf16, #tpu.memory_space<vmem>>, vector<128x128xbf16>
    %c0_3 = arith.constant 0 : index
    %c0_4 = arith.constant 0 : index
    %2 = vector.load %arg3[%c0_3, %c0_4] : memref<1x128xf32, #tpu.memory_space<vmem>>, vector<1x128xf32>
    %3 = vector.shape_cast %2 : vector<1x128xf32> to vector<1x128xf32>
    %4 = vector.broadcast %3 : vector<1x128xf32> to vector<16x128xf32>
    %c0_5 = arith.constant 0 : index
    %c0_6 = arith.constant 0 : index
    %5 = vector.load %arg5[%c0_5, %c0_6] : memref<1x128xf32, #tpu.memory_space<vmem>>, vector<1x128xf32>
    %6 = vector.shape_cast %5 : vector<1x128xf32> to vector<1x128xf32>
    %7 = vector.broadcast %6 : vector<1x128xf32> to vector<16x128xf32>
    %c0_7 = arith.constant 0 : index
    %c0_8 = arith.constant 0 : index
    %8 = vector.load %arg1[%c0_7, %c0_8] : memref<16x128xf32, #tpu.memory_space<vmem>>, vector<16x128xf32>
    %9 = arith.truncf %8 : vector<16x128xf32> to vector<16x128xbf16>
    %cst = arith.constant dense<0.000000e+00> : vector<16x128xf32>
    %10 = tpu.matmul %9, %0, %cst {dimension_numbers = #tpu.dot_dimension_numbers<[1], [0], [0], [1], [0, 0, 1, 1], [], []>} : vector<16x128xbf16>, vector<128x128xbf16>, vector<16x128xf32> -> vector<16x128xf32>
    %11 = arith.addf %10, %4 : vector<16x128xf32>
    %cst_9 = arith.constant 0.000000e+00 : f32
    %12 = vector.broadcast %cst_9 : f32 to vector<16x128xf32>
    %13 = arith.maximumf %11, %12 : vector<16x128xf32>
    %14 = arith.mulf %13, %13 : vector<16x128xf32>
    %15 = arith.mulf %14, %13 : vector<16x128xf32>
    %16 = arith.truncf %15 : vector<16x128xf32> to vector<16x128xbf16>
    %cst_10 = arith.constant dense<0.000000e+00> : vector<16x128xf32>
    %17 = tpu.matmul %16, %1, %cst_10 {dimension_numbers = #tpu.dot_dimension_numbers<[1], [0], [0], [1], [0, 0, 1, 1], [], []>} : vector<16x128xbf16>, vector<128x128xbf16>, vector<16x128xf32> -> vector<16x128xf32>
    %18 = arith.addf %17, %7 : vector<16x128xf32>
    %cst_11 = arith.constant 0.000000e+00 : f32
    %19 = vector.broadcast %cst_11 : f32 to vector<16x128xf32>
    %20 = arith.maximumf %18, %19 : vector<16x128xf32>
    %21 = arith.mulf %20, %20 : vector<16x128xf32>
    %22 = arith.mulf %21, %20 : vector<16x128xf32>
    %23 = arith.addf %22, %8 : vector<16x128xf32>
    %c0_12 = arith.constant 0 : index
    %c0_13 = arith.constant 0 : index
    %24 = vector.load %arg6[%c0_12, %c0_13] : memref<16x128xf32, #tpu.memory_space<vmem>>, vector<16x128xf32>
    tpu.vector_store %arg6[%c0_12, %c0_13], %23 {strides = array<i32>} : memref<16x128xf32, #tpu.memory_space<vmem>>, vector<16x128xf32>,
    return
  }
  func.func @transform_0(%arg0: i32) -> (i32, i32) {
    %c0_i32 = arith.constant 0 : i32
    %c0_i32_0 = arith.constant 0 : i32
    return %arg0, %c0_i32 : i32, i32
  }
  func.func @transform_1(%arg0: i32) -> (i32, i32) {
    %c0_i32 = arith.constant 0 : i32
    %c0_i32_0 = arith.constant 0 : i32
    %c0_i32_1 = arith.constant 0 : i32
    return %c0_i32, %c0_i32_0 : i32, i32
  }
  func.func @transform_2(%arg0: i32) -> (i32, i32) {
    %c0_i32 = arith.constant 0 : i32
    %c0_i32_0 = arith.constant 0 : i32
    %c0_i32_1 = arith.constant 0 : i32
    return %c0_i32, %c0_i32_0 : i32, i32
  }
  func.func @transform_3(%arg0: i32) -> (i32, i32) {
    %c0_i32 = arith.constant 0 : i32
    %c0_i32_0 = arith.constant 0 : i32
    %c0_i32_1 = arith.constant 0 : i32
    return %c0_i32, %c0_i32_0 : i32, i32
  }
  func.func @transform_4(%arg0: i32) -> (i32, i32) {
    %c0_i32 = arith.constant 0 : i32
    %c0_i32_0 = arith.constant 0 : i32
    %c0_i32_1 = arith.constant 0 : i32
    return %c0_i32, %c0_i32_0 : i32, i32
  }
  func.func @transform_5(%arg0: i32) -> (i32, i32) {
    %c0_i32 = arith.constant 0 : i32
    %c0_i32_0 = arith.constant 0 : i32
    return %arg0, %c0_i32 : i32, i32
  }
}

module attributes {stable_mosaic.version = 11 : i64} {
  func.func @kernel(%arg0: i32, %arg1: memref<16x128xf32, #tpu.memory_space<vmem>>, %arg2: memref<128x128xbf16, #tpu.memory_space<vmem>>, %arg3: memref<1x128xf32, #tpu.memory_space<vmem>>, %arg4: memref<128x128xbf16, #tpu.memory_space<vmem>>, %arg5: memref<1x128xf32, #tpu.memory_space<vmem>>, %arg6: memref<16x128xf32, #tpu.memory_space<vmem>>) attributes {dimension_semantics = [#tpu.dimension_semantics<parallel>], iteration_bounds = array<i64: 2>, scalar_prefetch = 0 : i64, scratch_operands = 0 : i64, tpu.core_type = #tpu.core_type<tc>, window_params = [{transform_indices = @transform_0, window_bounds = array<i64: 16, 128>}, {pipeline_mode = #tpu.pipeline_mode<synchronous>, transform_indices = @transform_1, window_bounds = array<i64: 128, 128>}, {pipeline_mode = #tpu.pipeline_mode<synchronous>, transform_indices = @transform_2, window_bounds = array<i64: 1, 128>}, {pipeline_mode = #tpu.pipeline_mode<synchronous>, transform_indices = @transform_3, window_bounds = array<i64: 128, 128>}, {pipeline_mode = #tpu.pipeline_mode<synchronous>, transform_indices = @transform_4, window_bounds = array<i64: 1, 128>}, {transform_indices = @transform_5, window_bounds = array<i64: 16, 128>}]} {
    %c0 = arith.constant 0 : index
    %c0_0 = arith.constant 0 : index
    %0 = vector.load %arg2[%c0, %c0_0] : memref<128x128xbf16, #tpu.memory_space<vmem>>, vector<128x128xbf16>
    %c0_1 = arith.constant 0 : index
    %c0_2 = arith.constant 0 : index
    %1 = vector.load %arg4[%c0_1, %c0_2] : memref<128x128xbf16, #tpu.memory_space<vmem>>, vector<128x128xbf16>
    %c0_3 = arith.constant 0 : index
    %c0_4 = arith.constant 0 : index
    %2 = vector.load %arg3[%c0_3, %c0_4] : memref<1x128xf32, #tpu.memory_space<vmem>>, vector<1x128xf32>
    %3 = vector.shape_cast %2 : vector<1x128xf32> to vector<1x128xf32>
    %4 = vector.broadcast %3 : vector<1x128xf32> to vector<16x128xf32>
    %c0_5 = arith.constant 0 : index
    %c0_6 = arith.constant 0 : index
    %5 = vector.load %arg5[%c0_5, %c0_6] : memref<1x128xf32, #tpu.memory_space<vmem>>, vector<1x128xf32>
    %6 = vector.shape_cast %5 : vector<1x128xf32> to vector<1x128xf32>
    %7 = vector.broadcast %6 : vector<1x128xf32> to vector<16x128xf32>
    %c0_7 = arith.constant 0 : index
    %c0_8 = arith.constant 0 : index
    %8 = vector.load %arg1[%c0_7, %c0_8] : memref<16x128xf32, #tpu.memory_space<vmem>>, vector<16x128xf32>
    %9 = arith.truncf %8 : vector<16x128xf32> to vector<16x128xbf16>
    %cst = arith.constant dense<0.000000e+00> : vector<16x128xf32>
    %10 = tpu.matmul %9, %0, %cst {dimension_numbers = #tpu.dot_dimension_numbers<[1], [0], [0], [1], [0, 0, 1, 1], [], []>} : vector<16x128xbf16>, vector<128x128xbf16>, vector<16x128xf32> -> vector<16x128xf32>
    %11 = arith.addf %10, %4 : vector<16x128xf32>
    %cst_9 = arith.constant 0.000000e+00 : f32
    %12 = vector.broadcast %cst_9 : f32 to vector<16x128xf32>
    %13 = arith.maximumf %11, %12 : vector<16x128xf32>
    %14 = arith.mulf %13, %13 : vector<16x128xf32>
    %15 = arith.mulf %14, %13 : vector<16x128xf32>
    %16 = arith.truncf %15 : vector<16x128xf32> to vector<16x128xbf16>
    %cst_10 = arith.constant dense<0.000000e+00> : vector<16x128xf32>
    %17 = tpu.matmul %16, %1, %cst_10 {dimension_numbers = #tpu.dot_dimension_numbers<[1], [0], [0], [1], [0, 0, 1, 1], [], []>} : vector<16x128xbf16>, vector<128x128xbf16>, vector<16x128xf32> -> vector<16x128xf32>
    %18 = arith.addf %17, %7 : vector<16x128xf32>
    %cst_11 = arith.constant 0.000000e+00 : f32
    %19 = vector.broadcast %cst_11 : f32 to vector<16x128xf32>
    %20 = arith.maximumf %18, %19 : vector<16x128xf32>
    %21 = arith.mulf %20, %20 : vector<16x128xf32>
    %22 = arith.mulf %21, %20 : vector<16x128xf32>
    %23 = arith.addf %22, %8 : vector<16x128xf32>
    %c0_12 = arith.constant 0 : index
    %c0_13 = arith.constant 0 : index
    %24 = vector.load %arg6[%c0_12, %c0_13] : memref<16x128xf32, #tpu.memory_space<vmem>>, vector<16x128xf32>
    tpu.vector_store %arg6[%c0_12, %c0_13], %23 {strides = array<i32>} : memref<16x128xf32, #tpu.memory_space<vmem>>, vector<16x128xf32>,
    return
  }
  func.func @transform_0(%arg0: i32) -> (i32, i32) {
    %c0_i32 = arith.constant 0 : i32
    %c0_i32_0 = arith.constant 0 : i32
    return %arg0, %c0_i32 : i32, i32
  }
  func.func @transform_1(%arg0: i32) -> (i32, i32) {
    %c0_i32 = arith.constant 0 : i32
    %c0_i32_0 = arith.constant 0 : i32
    %c0_i32_1 = arith.constant 0 : i32
    return %c0_i32, %c0_i32_0 : i32, i32
  }
  func.func @transform_2(%arg0: i32) -> (i32, i32) {
    %c0_i32 = arith.constant 0 : i32
    %c0_i32_0 = arith.constant 0 : i32
    %c0_i32_1 = arith.constant 0 : i32
    return %c0_i32, %c0_i32_0 : i32, i32
  }
  func.func @transform_3(%arg0: i32) -> (i32, i32) {
    %c0_i32 = arith.constant 0 : i32
    %c0_i32_0 = arith.constant 0 : i32
    %c0_i32_1 = arith.constant 0 : i32
    return %c0_i32, %c0_i32_0 : i32, i32
  }
  func.func @transform_4(%arg0: i32) -> (i32, i32) {
    %c0_i32 = arith.constant 0 : i32
    %c0_i32_0 = arith.constant 0 : i32
    %c0_i32_1 = arith.constant 0 : i32
    return %c0_i32, %c0_i32_0 : i32, i32
  }
  func.func @transform_5(%arg0: i32) -> (i32, i32) {
    %c0_i32 = arith.constant 0 : i32
    %c0_i32_0 = arith.constant 0 : i32
    return %arg0, %c0_i32 : i32, i32
  }
}

</mosaic_0001>

<llo_original>
// kernel: _forward.1
$region0: #{_forward.1}
  #allocation0 [shape = 'u32[]', space=smem, size = 0x4, offset = 0x4, fixed_abs, tag = 'smem constant byte address 0x4 - core index']
  #allocation1 [shape = 'u32[144,128]{1,0:T(1,128)}', space=vmem, size = 0x12000, scoped, tag = 'internal scratch']
  %s0 = inlined_call_operand.vmem [shape: f32[32,128], index: 0, kind: input, shape index: {}, may-alias: {0,5}]
  %s1 = inlined_call_operand.vmem [shape: bf16[128,128], index: 1, kind: input, shape index: {}]
  %s2 = inlined_call_operand.vmem [shape: f32[1,128], index: 2, kind: input, shape index: {}]
  %s3 = inlined_call_operand.hbm [shape: bf16[128,128], index: 3, kind: input, shape index: {}]
  %s4 = inlined_call_operand.vmem [shape: f32[1,128], index: 4, kind: input, shape index: {}]
  %s5 = inlined_call_operand.vmem [shape: f32[32,128], index: 5, kind: output, shape index: {}, may-alias: {0,5}]
  %s6 = sld [smem:[#allocation0]]
  $region57: #{_forward.1} parent=0
    _
  %s8 = ssub.s32 1, %s6
  %s9 = scalar_select 0, %s8, %s6
  $region1: #{_forward.1} parent=0
    #allocation2 [shape = 'u8[32768]{0}', space=vmem, size = 0x8000, scoped, tag = 'input window, operand 3, single buffered']
    #allocation3 [shape = 's32[2]{0}', space=sflag, size = 0x8, scoped, tag = 'scoped memory for _forward.1']
    %10 = vsyncpa [#allocation3], 0
    loop: start=0, step=1, limit=4
    $region2: #{_forward.1} parent=1 // loop_pre_header
      _
    $region3: #{_forward.1} parent=1 // loop_header
      %s12 = sphi 0, %s16
      %p13 = scmp.ge.s32.totalorder %s12, 4
      %s22 = sphi 0, %s24
      %s25 = sphi 0, %s22
      %s26 = sphi 0, %s25
      %s42 = sphi 0, %s26
      %s46 = sphi 0, %s46
      %s48 = sphi 0, %s46
      %s49 = sphi 0, %s48
      %s63 = sphi 0, %s49
      %s67 = sphi 0, %s67
      %s69 = sphi 0, %s67
      %s70 = sphi 0, %s69
      %s84 = sphi 0, %s70
      %s88 = sphi 0, %s88
      %s90 = sphi 0, %s88
      %s91 = sphi 0, %s90
      %s105 = sphi 0, %s91
      %s109 = sphi 0, %s109
      %s111 = sphi 0, %s109
      %s112 = sphi 0, %s111
      %s126 = sphi 0, %s112
      %s132 = sphi 0, %s134
      %s135 = sphi 0, %s132
      %s136 = sphi 0, %s135
      %s152 = sphi 0, %s136
    $region4: #{_forward.1} parent=1 // loop_header_branch
      %15 = sbr.rel (%p13) target = $region8
    $region5: #{_forward.1} parent=1 // loop_body
      %s17 = ssub.s32 %s12, 1
      %s18 = ssub.s32 %s12, 2
      %s19 = sadd.s32 %s12, 1
      %s20 = ssub.s32 %s12, %s19
      %p21 = scmp.eq.s32.totalorder %s20, 0
      %s23 = sadd.s32 %s22, 1
      %s24 = scalar_select %p21, %s22, %s23
      %p27 = pneg %p21
      %p28 = scmp.eq.s32.totalorder %s12, 1
      %p29 = por %p27, %p28
      %p30 = scmp.ne.s32.totalorder %s22, %s25
      %p31 = scmp.eq.s32.totalorder %s12, 0
      %p32 = por %p30, %p31
      %p33 = scmp.ne.s32.totalorder %s22, %s25
      %p34 = scmp.eq.s32.totalorder %s17, 1
      %p35 = por %p33, %p34
      %p36 = scmp.ne.s32.totalorder %s25, %s26
      %p37 = scmp.eq.s32.totalorder %s17, 0
      %p38 = por %p36, %p37
      %p39 = scmp.ne.s32.totalorder %s25, %s26
      %p40 = scmp.eq.s32.totalorder %s18, 1
      %p41 = por %p39, %p40
      %p43 = scmp.ne.s32.totalorder %s26, %s42
      %p44 = scmp.eq.s32.totalorder %s18, 0
      %p45 = por %p43, %p44
      %s47 = sadd.s32 %s46, 1
      %p50 = scmp.eq.s32.totalorder %s12, 1
      %p51 = scmp.ne.s32.totalorder %s46, %s48
      %p52 = scmp.eq.s32.totalorder %s12, 0
      %p53 = por %p51, %p52
      %p54 = scmp.ne.s32.totalorder %s46, %s48
      %p55 = scmp.eq.s32.totalorder %s17, 1
      %p56 = por %p54, %p55
      %p57 = scmp.ne.s32.totalorder %s48, %s49
      %p58 = scmp.eq.s32.totalorder %s17, 0
      %p59 = por %p57, %p58
      %p60 = scmp.ne.s32.totalorder %s48, %s49
      %p61 = scmp.eq.s32.totalorder %s18, 1
      %p62 = por %p60, %p61
      %p64 = scmp.ne.s32.totalorder %s49, %s63
      %p65 = scmp.eq.s32.totalorder %s18, 0
      %p66 = por %p64, %p65
      %s68 = sadd.s32 %s67, 1
      %p71 = scmp.eq.s32.totalorder %s12, 1
      %p72 = scmp.ne.s32.totalorder %s67, %s69
      %p73 = scmp.eq.s32.totalorder %s12, 0
      %p74 = por %p72, %p73
      %p75 = scmp.ne.s32.totalorder %s67, %s69
      %p76 = scmp.eq.s32.totalorder %s17, 1
      %p77 = por %p75, %p76
      %p78 = scmp.ne.s32.totalorder %s69, %s70
      %p79 = scmp.eq.s32.totalorder %s17, 0
      %p80 = por %p78, %p79
      %p81 = scmp.ne.s32.totalorder %s69, %s70
      %p82 = scmp.eq.s32.totalorder %s18, 1
      %p83 = por %p81, %p82
      %p85 = scmp.ne.s32.totalorder %s70, %s84
      %p86 = scmp.eq.s32.totalorder %s18, 0
      %p87 = por %p85, %p86
      %s89 = sadd.s32 %s88, 1
      %p92 = scmp.eq.s32.totalorder %s12, 1
      %p93 = scmp.ne.s32.totalorder %s88, %s90
      %p94 = scmp.eq.s32.totalorder %s12, 0
      %p95 = por %p93, %p94
      %p96 = scmp.ne.s32.totalorder %s88, %s90
      %p97 = scmp.eq.s32.totalorder %s17, 1
      %p98 = por %p96, %p97
      %p99 = scmp.ne.s32.totalorder %s90, %s91
      %p100 = scmp.eq.s32.totalorder %s17, 0
      %p101 = por %p99, %p100
      %p102 = scmp.ne.s32.totalorder %s90, %s91
      %p103 = scmp.eq.s32.totalorder %s18, 1
      %p104 = por %p102, %p103
      %p106 = scmp.ne.s32.totalorder %s91, %s105
      %p107 = scmp.eq.s32.totalorder %s18, 0
      %p108 = por %p106, %p107
      %s110 = sadd.s32 %s109, 1
      %p113 = scmp.eq.s32.totalorder %s12, 1
      %p114 = scmp.ne.s32.totalorder %s109, %s111
      %p115 = scmp.eq.s32.totalorder %s12, 0
      %p116 = por %p114, %p115
      %p117 = scmp.ne.s32.totalorder %s109, %s111
      %p118 = scmp.eq.s32.totalorder %s17, 1
      %p119 = por %p117, %p118
      %p120 = scmp.ne.s32.totalorder %s111, %s112
      %p121 = scmp.eq.s32.totalorder %s17, 0
      %p122 = por %p120, %p121
      %p123 = scmp.ne.s32.totalorder %s111, %s112
      %p124 = scmp.eq.s32.totalorder %s18, 1
      %p125 = por %p123, %p124
      %p127 = scmp.ne.s32.totalorder %s112, %s126
      %p128 = scmp.eq.s32.totalorder %s18, 0
      %p129 = por %p127, %p128
      %s130 = ssub.s32 %s12, %s19
      %p131 = scmp.eq.s32.totalorder %s130, 0
      %s133 = sadd.s32 %s132, 1
      %s134 = scalar_select %p131, %s132, %s133
      %p137 = pneg %p131
      %p138 = scmp.eq.s32.totalorder %s12, 1
      %p139 = por %p137, %p138
      %p140 = scmp.ne.s32.totalorder %s132, %s135
      %p141 = scmp.eq.s32.totalorder %s12, 0
      %p142 = por %p140, %p141
      %p143 = scmp.ne.s32.totalorder %s132, %s135
      %p144 = scmp.eq.s32.totalorder %s17, 1
      %p145 = por %p143, %p144
      %p146 = scmp.ne.s32.totalorder %s135, %s136
      %p147 = scmp.eq.s32.totalorder %s17, 0
      %p148 = por %p146, %p147
      %p149 = scmp.ne.s32.totalorder %s135, %s136
      %p150 = scmp.eq.s32.totalorder %s18, 1
      %p151 = por %p149, %p150
      %p153 = scmp.ne.s32.totalorder %s136, %s152
      %p154 = scmp.eq.s32.totalorder %s18, 0
      %p155 = por %p153, %p154
      %p156 = scmp.le.s32.totalorder 1, %s12
      %p157 = scmp.lt.s32.totalorder %s12, 3
      %p158 = pnand %p156, %p157
      %p159 = pneg %p158
      // Predicated region
      $region9: #{_forward.1} parent=5 // pred_check
        _
      $region10: #{_forward.1} parent=5 // pred_check_branch
        %161 = sbr.rel (%p158) target = $region12
      $region11: #{_forward.1} parent=5 // pred_region
        %s162 = ssub.s32 %s12, 1
        // Predicated region
        $region13: #{_forward.1} parent=11 // pred_check
          %p163 = pneg %p59
        $region14: #{_forward.1} parent=11 // pred_check_branch
          %165 = sbr.rel (%p163) target = $region16
        $region15: #{_forward.1} parent=11 // pred_region
          _
        $region16: #{_forward.1} parent=11 // pred_fallthru
          _
        // Predicated region
        $region17: #{_forward.1} parent=11 // pred_check
          %p166 = pneg %p80
        $region18: #{_forward.1} parent=11 // pred_check_branch
          %168 = sbr.rel (%p166) target = $region20
        $region19: #{_forward.1} parent=11 // pred_region
          _
        $region20: #{_forward.1} parent=11 // pred_fallthru
          _
        // Predicated region
        $region21: #{_forward.1} parent=11 // pred_check
          %p169 = pneg %p101
        $region22: #{_forward.1} parent=11 // pred_check_branch
          %171 = sbr.rel (%p169) target = $region24
        $region23: #{_forward.1} parent=11 // pred_region
          %s173 = ssub.s32 1024, 1024
          %174 = vsyncadd [#allocation3], %s173
          %s175 = sshll.u32 [#allocation2], 4
          %s176 = int_to_ptr.vmem [resolvable:$true] %s175
          %181 = dma.hbm_to_vmem [thread:$0]  %s3, 1024, %s176, [#allocation3], 64, 64, 4
        $region24: #{_forward.1} parent=11 // pred_fallthru
          _
        // Predicated region
        $region25: #{_forward.1} parent=11 // pred_check
          %p182 = pneg %p122
        $region26: #{_forward.1} parent=11 // pred_check_branch
          %184 = sbr.rel (%p182) target = $region28
        $region27: #{_forward.1} parent=11 // pred_region
          _
        $region28: #{_forward.1} parent=11 // pred_fallthru
          _
      $region12: #{_forward.1} parent=5 // pred_fallthru
        _
      %p185 = scmp.lt.s32.totalorder %s12, 2
      // Predicated region
      $region29: #{_forward.1} parent=5 // pred_check
        %p186 = pneg %p185
      $region30: #{_forward.1} parent=5 // pred_check_branch
        %188 = sbr.rel (%p186) target = $region32
      $region31: #{_forward.1} parent=5 // pred_region
        // Predicated region
        $region33: #{_forward.1} parent=31 // pred_check
          %p189 = pneg %p32
        $region34: #{_forward.1} parent=31 // pred_check_branch
          %191 = sbr.rel (%p189) target = $region36
        $region35: #{_forward.1} parent=31 // pred_region
          %s192 = smul.u32 2, %s12
          %p193 = scmp.lt.s32.totalorder %s192, 3
          %s194 = scalar_select %p193, %s192, 3
          %s195 = smul.addr %s194, 8
          %s196 = scalar_lea.vmem %s0, %s195
          %s197 = smul.u32 2, %s12
        $region36: #{_forward.1} parent=31 // pred_fallthru
          _
      $region32: #{_forward.1} parent=5 // pred_fallthru
        _
      %p198 = scmp.le.s32.totalorder 1, %s12
      %p199 = scmp.lt.s32.totalorder %s12, 3
      %p200 = pnand %p198, %p199
      %p201 = pneg %p200
      // Predicated region
      $region37: #{_forward.1} parent=5 // pred_check
        _
      $region38: #{_forward.1} parent=5 // pred_check_branch
        %203 = sbr.rel (%p200) target = $region40
      $region39: #{_forward.1} parent=5 // pred_region
        %s204 = ssub.s32 %s12, 1
        // Predicated region
        $region41: #{_forward.1} parent=39 // pred_check
          %p205 = pneg %p101
        $region42: #{_forward.1} parent=39 // pred_check_branch
          %207 = sbr.rel (%p205) target = $region44
        $region43: #{_forward.1} parent=39 // pred_region
          %208 = dma.done [#allocation3], 1024
        $region44: #{_forward.1} parent=39 // pred_fallthru
          _
        %s209 = smul.u32 2, %s17
        %p210 = scmp.lt.s32.totalorder %s209, 3
        %s211 = scalar_select %p210, %s209, 3
        %s212 = smul.addr %s211, 8
        %s213 = scalar_lea.vmem %s0, %s212
        %p214 = pneg %p38
        %p215 = pneg %p35
        %p216 = pneg %p59
        %p217 = pneg %p56
        %p218 = pneg %p80
        %p219 = pneg %p77
        %p220 = pneg %p101
        %p221 = pneg %p98
        %p222 = pneg %p122
        %p223 = pneg %p119
        %p224 = pneg %p148
        %p225 = pneg %p145
        %s226 = smul.u32 2, %s17
        %p227 = scmp.lt.s32.totalorder %s226, 3
        %s228 = scalar_select %p227, %s226, 3
        %s229 = smul.addr %s228, 8
        %s230 = scalar_lea.vmem %s5, %s229
        %s231 = smul.u32 2, %s17
        %p232 = scmp.lt.s32.totalorder %s231, 3
        %s233 = scalar_select %p232, %s231, 3
        %s234 = smul.addr %s233, 8
        %s235 = scalar_lea.vmem %s0, %s234
        %s236 = smul.u32 2, %s17
        %s237 = smul.u32 2, %s17
        %p238 = scmp.lt.s32.totalorder %s237, 3
        %s239 = scalar_select %p238, %s237, 3
        %s240 = smul.addr %s239, 8
        %s241 = scalar_lea.vmem %s5, %s240
        %s242 = smul.u32 2, %s17
        %v244 = vld [vmem:[%s1] sm:$0xf]
        %v245 = vld [vmem:[%s1 + $0x4] sm:$0xf]
        %v246 = vld [vmem:[%s1 + $0x8] sm:$0xf]
        %v247 = vld [vmem:[%s1 + $0xc] sm:$0xf]
        %v248 = vld [vmem:[%s1 + $0x10] sm:$0xf]
        %v249 = vld [vmem:[%s1 + $0x14] sm:$0xf]
        %v250 = vld [vmem:[%s1 + $0x18] sm:$0xf]
        %v251 = vld [vmem:[%s1 + $0x1c] sm:$0xf]
        %v252 = vld [vmem:[%s1 + $0x20] sm:$0xf]
        %v253 = vld [vmem:[%s1 + $0x24] sm:$0xf]
        %v254 = vld [vmem:[%s1 + $0x28] sm:$0xf]
        %v255 = vld [vmem:[%s1 + $0x2c] sm:$0xf]
        %v256 = vld [vmem:[%s1 + $0x30] sm:$0xf]
        %v257 = vld [vmem:[%s1 + $0x34] sm:$0xf]
        %v258 = vld [vmem:[%s1 + $0x38] sm:$0xf]
        %v259 = vld [vmem:[%s1 + $0x3c] sm:$0xf]
        %v260 = vld [vmem:[#allocation2] sm:$0xf]
        %v261 = vld [vmem:[#allocation2 + $0x4] sm:$0xf]
        %v262 = vld [vmem:[#allocation2 + $0x8] sm:$0xf]
        %v263 = vld [vmem:[#allocation2 + $0xc] sm:$0xf]
        %v264 = vld [vmem:[#allocation2 + $0x10] sm:$0xf]
        %v265 = vld [vmem:[#allocation2 + $0x14] sm:$0xf]
        %v266 = vld [vmem:[#allocation2 + $0x18] sm:$0xf]
        %v267 = vld [vmem:[#allocation2 + $0x1c] sm:$0xf]
        %v268 = vld [vmem:[#allocation2 + $0x20] sm:$0xf]
        %v269 = vld [vmem:[#allocation2 + $0x24] sm:$0xf]
        %v270 = vld [vmem:[#allocation2 + $0x28] sm:$0xf]
        %v271 = vld [vmem:[#allocation2 + $0x2c] sm:$0xf]
        %v272 = vld [vmem:[#allocation2 + $0x30] sm:$0xf]
        %v273 = vld [vmem:[#allocation2 + $0x34] sm:$0xf]
        %v274 = vld [vmem:[#allocation2 + $0x38] sm:$0xf]
        %v275 = vld [vmem:[#allocation2 + $0x3c] sm:$0xf]
        %v276 = vld [vmem:[%s2] sm:$0x1]
        %v278 = vlaneseq
        %v279 = vshrl.u32 %v278, 7
        %v280 = vsub.s32 0, %v279
        %v281 = vrot.slane %v276, %v280
        %v283 = vld [vmem:[%s4] sm:$0x1]
        %v285 = vlaneseq
        %v286 = vshrl.u32 %v285, 7
        %v287 = vsub.s32 0, %v286
        %v288 = vrot.slane %v283, %v287
        %v290 = vld [vmem:[%s235] sm:$0xff]
        %v291 = vld [vmem:[%s235 + $0x8] sm:$0xff]
        %v292 = vpack.c.bf16 %v291, %v290
        %v309 = vunpack.c.l.b16 %v244
        %v310 = vunpack.c.l.b16 %v245
        %v311 = vunpack.c.l.b16 %v246
        %v312 = vunpack.c.l.b16 %v247
        %v313 = vunpack.c.l.b16 %v248
        %v314 = vunpack.c.l.b16 %v249
        %v315 = vunpack.c.l.b16 %v250
        %v316 = vunpack.c.l.b16 %v251
        %v317 = vunpack.c.l.b16 %v252
        %v318 = vunpack.c.l.b16 %v253
        %v319 = vunpack.c.l.b16 %v254
        %v320 = vunpack.c.l.b16 %v255
        %v321 = vunpack.c.l.b16 %v256
        %v322 = vunpack.c.l.b16 %v257
        %v323 = vunpack.c.l.b16 %v258
        %v324 = vunpack.c.l.b16 %v259
        %v325 = vpack.c.b16 %v310, %v309
        %v326 = vpack.c.b16 %v312, %v311
        %v327 = vpack.c.b16 %v314, %v313
        %v328 = vpack.c.b16 %v316, %v315
        %v329 = vpack.c.b16 %v318, %v317
        %v330 = vpack.c.b16 %v320, %v319
        %v331 = vpack.c.b16 %v322, %v321
        %v332 = vpack.c.b16 %v324, %v323
        %341 = vmatprep.subr.bf16.mxu0 0
        %342 = vmatpush1.bf16.msra.mxu0 %v325
        %343 = vmatprep.subr.bf16.mxu0 0
        %344 = vmatpush1.bf16.msra.mxu0 %v326
        %345 = vmatprep.subr.bf16.mxu0 0
        %346 = vmatpush1.bf16.msra.mxu0 %v327
        %347 = vmatprep.subr.bf16.mxu0 0
        %348 = vmatpush1.bf16.msra.mxu0 %v328
        %349 = vmatprep.subr.bf16.mxu0 0
        %350 = vmatpush1.bf16.msra.mxu0 %v329
        %351 = vmatprep.subr.bf16.mxu0 0
        %352 = vmatpush1.bf16.msra.mxu0 %v330
        %353 = vmatprep.subr.bf16.mxu0 0
        %354 = vmatpush1.bf16.msra.mxu0 %v331
        %355 = vmatprep.subr.bf16.mxu0 0
        %356 = vmatpush1.bf16.msra.mxu0 %v332
        %357 = vmatprep.subr.bf16.mxu0 0
        %358 = vmatpush1.bf16.msra.mxu0 0
        %359 = vmatprep.subr.bf16.mxu0 0
        %360 = vmatpush1.bf16.msra.mxu0 0
        %361 = vmatprep.subr.bf16.mxu0 0
        %362 = vmatpush1.bf16.msra.mxu0 0
        %363 = vmatprep.subr.bf16.mxu0 0
        %364 = vmatpush1.bf16.msra.mxu0 0
        %365 = vmatprep.subr.bf16.mxu0 0
        %366 = vmatpush1.bf16.msra.mxu0 0
        %367 = vmatprep.subr.bf16.mxu0 0
        %368 = vmatpush1.bf16.msra.mxu0 0
        %369 = vmatprep.subr.bf16.mxu0 0
        %370 = vmatpush1.bf16.msra.mxu0 0
        %371 = vmatprep.subr.bf16.mxu0 0
        %372 = vmatpush1.bf16.msra.mxu0 0
        %373 = vmatprep.mubr.bf16.mxu0 0
        %374 = vmatmul.mubr.bf16.gmra.mrb[0].mxu0 %v292
        %v375 = vpop.f32.mrb[0].mxu0
        %v376 = vadd.f32 %v281, %v375
        %v377 = vpop.f32.mrb[0].mxu0
        %v378 = vpop.f32.mrb[0].mxu0
        %v379 = vadd.f32 %v281, %v378
        %v380 = vpop.f32.mrb[0].mxu0
        %381 = vdwg.mxu0
        %v382 = vmax.f32 %v376, 0.0
        %v383 = vmax.f32 %v379, 0.0
        %v384 = vmul.f32 %v382, %v382
        %v385 = vmul.f32 %v383, %v383
        %v386 = vmul.f32 %v384, %v382
        %v387 = vmul.f32 %v385, %v383
        %v388 = vpack.c.bf16 %v387, %v386
        %v405 = vunpack.c.l.b16 %v260
        %v406 = vunpack.c.l.b16 %v261
        %v407 = vunpack.c.l.b16 %v262
        %v408 = vunpack.c.l.b16 %v263
        %v409 = vunpack.c.l.b16 %v264
        %v410 = vunpack.c.l.b16 %v265
        %v411 = vunpack.c.l.b16 %v266
        %v412 = vunpack.c.l.b16 %v267
        %v413 = vunpack.c.l.b16 %v268
        %v414 = vunpack.c.l.b16 %v269
        %v415 = vunpack.c.l.b16 %v270
        %v416 = vunpack.c.l.b16 %v271
        %v417 = vunpack.c.l.b16 %v272
        %v418 = vunpack.c.l.b16 %v273
        %v419 = vunpack.c.l.b16 %v274
        %v420 = vunpack.c.l.b16 %v275
        %v421 = vpack.c.b16 %v406, %v405
        %v422 = vpack.c.b16 %v408, %v407
        %v423 = vpack.c.b16 %v410, %v409
        %v424 = vpack.c.b16 %v412, %v411
        %v425 = vpack.c.b16 %v414, %v413
        %v426 = vpack.c.b16 %v416, %v415
        %v427 = vpack.c.b16 %v418, %v417
        %v428 = vpack.c.b16 %v420, %v419
        %437 = vmatprep.subr.bf16.mxu0 0
        %438 = vmatpush1.bf16.msra.mxu0 %v421
        %439 = vmatprep.subr.bf16.mxu0 0
        %440 = vmatpush1.bf16.msra.mxu0 %v422
        %441 = vmatprep.subr.bf16.mxu0 0
        %442 = vmatpush1.bf16.msra.mxu0 %v423
        %443 = vmatprep.subr.bf16.mxu0 0
        %444 = vmatpush1.bf16.msra.mxu0 %v424
        %445 = vmatprep.subr.bf16.mxu0 0
        %446 = vmatpush1.bf16.msra.mxu0 %v425
        %447 = vmatprep.subr.bf16.mxu0 0
        %448 = vmatpush1.bf16.msra.mxu0 %v426
        %449 = vmatprep.subr.bf16.mxu0 0
        %450 = vmatpush1.bf16.msra.mxu0 %v427
        %451 = vmatprep.subr.bf16.mxu0 0
        %452 = vmatpush1.bf16.msra.mxu0 %v428
        %453 = vmatprep.subr.bf16.mxu0 0
        %454 = vmatpush1.bf16.msra.mxu0 0
        %455 = vmatprep.subr.bf16.mxu0 0
        %456 = vmatpush1.bf16.msra.mxu0 0
        %457 = vmatprep.subr.bf16.mxu0 0
        %458 = vmatpush1.bf16.msra.mxu0 0
        %459 = vmatprep.subr.bf16.mxu0 0
        %460 = vmatpush1.bf16.msra.mxu0 0
        %461 = vmatprep.subr.bf16.mxu0 0
        %462 = vmatpush1.bf16.msra.mxu0 0
        %463 = vmatprep.subr.bf16.mxu0 0
        %464 = vmatpush1.bf16.msra.mxu0 0
        %465 = vmatprep.subr.bf16.mxu0 0
        %466 = vmatpush1.bf16.msra.mxu0 0
        %467 = vmatprep.subr.bf16.mxu0 0
        %468 = vmatpush1.bf16.msra.mxu0 0
        %469 = vmatprep.mubr.bf16.mxu0 0
        %470 = vmatmul.mubr.bf16.gmra.mrb[0].mxu0 %v388
        %v471 = vpop.f32.mrb[0].mxu0
        %v472 = vadd.f32 %v288, %v471
        %v473 = vpop.f32.mrb[0].mxu0
        %v474 = vpop.f32.mrb[0].mxu0
        %v475 = vadd.f32 %v288, %v474
        %v476 = vpop.f32.mrb[0].mxu0
        %477 = vdwg.mxu0
        %v478 = vmax.f32 %v472, 0.0
        %v479 = vmax.f32 %v475, 0.0
        %v480 = vmul.f32 %v478, %v478
        %v481 = vmul.f32 %v479, %v479
        %v482 = vmul.f32 %v480, %v478
        %v483 = vmul.f32 %v481, %v479
        %v484 = vadd.f32 %v482, %v290
        %v485 = vadd.f32 %v483, %v291
        %486 = vst [vmem:[%s241] sm:$0xff] %v484
        %487 = vst [vmem:[%s241 + $0x8] sm:$0xff] %v485
        %s488 = smul.u32 2, %s17
        %p489 = scmp.lt.s32.totalorder %s488, 3
        %s490 = scalar_select %p489, %s488, 3
        %s491 = smul.addr %s490, 8
        %s492 = scalar_lea.vmem %s5, %s491
        // Predicated region
        $region45: #{_forward.1} parent=39 // pred_check
          %p493 = pneg %p145
        $region46: #{_forward.1} parent=39 // pred_check_branch
          %495 = sbr.rel (%p493) target = $region48
        $region47: #{_forward.1} parent=39 // pred_region
          %s496 = smul.u32 2, %s17
        $region48: #{_forward.1} parent=39 // pred_fallthru
          _
      $region40: #{_forward.1} parent=5 // pred_fallthru
        _
      %p497 = scmp.le.s32.totalorder 2, %s12
      // Predicated region
      $region49: #{_forward.1} parent=5 // pred_check
        %p498 = pneg %p497
      $region50: #{_forward.1} parent=5 // pred_check_branch
        %500 = sbr.rel (%p498) target = $region52
      $region51: #{_forward.1} parent=5 // pred_region
        %s501 = ssub.s32 %s12, 2
        // Predicated region
        $region53: #{_forward.1} parent=51 // pred_check
          %p502 = pneg %p151
        $region54: #{_forward.1} parent=51 // pred_check_branch
          %504 = sbr.rel (%p502) target = $region56
        $region55: #{_forward.1} parent=51 // pred_region
          %s505 = smul.u32 2, %s18
          %p506 = scmp.lt.s32.totalorder %s505, 3
          %s507 = scalar_select %p506, %s505, 3
          %s508 = smul.addr %s507, 8
          %s509 = scalar_lea.vmem %s5, %s508
        $region56: #{_forward.1} parent=51 // pred_fallthru
          _
      $region52: #{_forward.1} parent=5 // pred_fallthru
        _
    $region6: #{_forward.1} parent=1 // loop_footer
      %s16 = sadd.s32 1, %s12
    $region7: #{_forward.1} parent=1 // loop_footer_branch
      %11 = sbr.rel target = $region3
    $region8: #{_forward.1} parent=1 // loop_exit
      _
    %510 = vsyncpa [#allocation3], 1
    %s511 = scalar_lea.sflag [#allocation3], 1
    %512 = vsyncpa %s511, 1

// kernel: _forward.1
$region0: #{_forward.1}
  #allocation0 [shape = 'u32[]', space=smem, size = 0x4, offset = 0x4, fixed_abs, tag = 'smem constant byte address 0x4 - core index']
  #allocation1 [shape = 'u32[144,128]{1,0:T(1,128)}', space=vmem, size = 0x12000, scoped, tag = 'internal scratch']
  %s0 = inlined_call_operand.vmem [shape: f32[32,128], index: 0, kind: input, shape index: {}, may-alias: {0,5}]
  %s1 = inlined_call_operand.vmem [shape: bf16[128,128], index: 1, kind: input, shape index: {}]
  %s2 = inlined_call_operand.vmem [shape: f32[1,128], index: 2, kind: input, shape index: {}]
  %s3 = inlined_call_operand.hbm [shape: bf16[128,128], index: 3, kind: input, shape index: {}]
  %s4 = inlined_call_operand.vmem [shape: f32[1,128], index: 4, kind: input, shape index: {}]
  %s5 = inlined_call_operand.vmem [shape: f32[32,128], index: 5, kind: output, shape index: {}, may-alias: {0,5}]
  %s6 = sld [smem:[#allocation0]]
  $region57: #{_forward.1} parent=0
    _
  %s8 = ssub.s32 1, %s6
  %s9 = scalar_select 0, %s8, %s6
  $region1: #{_forward.1} parent=0
    #allocation2 [shape = 'u8[32768]{0}', space=vmem, size = 0x8000, scoped, tag = 'input window, operand 3, single buffered']
    #allocation3 [shape = 's32[2]{0}', space=sflag, size = 0x8, scoped, tag = 'scoped memory for _forward.1']
    %10 = vsyncpa [#allocation3], 0
    loop: start=0, step=1, limit=4
    $region2: #{_forward.1} parent=1 // loop_pre_header
      _
    $region3: #{_forward.1} parent=1 // loop_header
      %s12 = sphi 0, %s16
      %p13 = scmp.ge.s32.totalorder %s12, 4
      %s22 = sphi 0, %s24
      %s25 = sphi 0, %s22
      %s26 = sphi 0, %s25
      %s42 = sphi 0, %s26
      %s46 = sphi 0, %s46
      %s48 = sphi 0, %s46
      %s49 = sphi 0, %s48
      %s63 = sphi 0, %s49
      %s67 = sphi 0, %s67
      %s69 = sphi 0, %s67
      %s70 = sphi 0, %s69
      %s84 = sphi 0, %s70
      %s88 = sphi 0, %s88
      %s90 = sphi 0, %s88
      %s91 = sphi 0, %s90
      %s105 = sphi 0, %s91
      %s109 = sphi 0, %s109
      %s111 = sphi 0, %s109
      %s112 = sphi 0, %s111
      %s126 = sphi 0, %s112
      %s132 = sphi 0, %s134
      %s135 = sphi 0, %s132
      %s136 = sphi 0, %s135
      %s152 = sphi 0, %s136
    $region4: #{_forward.1} parent=1 // loop_header_branch
      %15 = sbr.rel (%p13) target = $region8
    $region5: #{_forward.1} parent=1 // loop_body
      %s17 = ssub.s32 %s12, 1
      %s18 = ssub.s32 %s12, 2
      %s19 = sadd.s32 %s12, 1
      %s20 = ssub.s32 %s12, %s19
      %p21 = scmp.eq.s32.totalorder %s20, 0
      %s23 = sadd.s32 %s22, 1
      %s24 = scalar_select %p21, %s22, %s23
      %p27 = pneg %p21
      %p28 = scmp.eq.s32.totalorder %s12, 1
      %p29 = por %p27, %p28
      %p30 = scmp.ne.s32.totalorder %s22, %s25
      %p31 = scmp.eq.s32.totalorder %s12, 0
      %p32 = por %p30, %p31
      %p33 = scmp.ne.s32.totalorder %s22, %s25
      %p34 = scmp.eq.s32.totalorder %s17, 1
      %p35 = por %p33, %p34
      %p36 = scmp.ne.s32.totalorder %s25, %s26
      %p37 = scmp.eq.s32.totalorder %s17, 0
      %p38 = por %p36, %p37
      %p39 = scmp.ne.s32.totalorder %s25, %s26
      %p40 = scmp.eq.s32.totalorder %s18, 1
      %p41 = por %p39, %p40
      %p43 = scmp.ne.s32.totalorder %s26, %s42
      %p44 = scmp.eq.s32.totalorder %s18, 0
      %p45 = por %p43, %p44
      %s47 = sadd.s32 %s46, 1
      %p50 = scmp.eq.s32.totalorder %s12, 1
      %p51 = scmp.ne.s32.totalorder %s46, %s48
      %p52 = scmp.eq.s32.totalorder %s12, 0
      %p53 = por %p51, %p52
      %p54 = scmp.ne.s32.totalorder %s46, %s48
      %p55 = scmp.eq.s32.totalorder %s17, 1
      %p56 = por %p54, %p55
      %p57 = scmp.ne.s32.totalorder %s48, %s49
      %p58 = scmp.eq.s32.totalorder %s17, 0
      %p59 = por %p57, %p58
      %p60 = scmp.ne.s32.totalorder %s48, %s49
      %p61 = scmp.eq.s32.totalorder %s18, 1
      %p62 = por %p60, %p61
      %p64 = scmp.ne.s32.totalorder %s49, %s63
      %p65 = scmp.eq.s32.totalorder %s18, 0
      %p66 = por %p64, %p65
      %s68 = sadd.s32 %s67, 1
      %p71 = scmp.eq.s32.totalorder %s12, 1
      %p72 = scmp.ne.s32.totalorder %s67, %s69
      %p73 = scmp.eq.s32.totalorder %s12, 0
      %p74 = por %p72, %p73
      %p75 = scmp.ne.s32.totalorder %s67, %s69
      %p76 = scmp.eq.s32.totalorder %s17, 1
      %p77 = por %p75, %p76
      %p78 = scmp.ne.s32.totalorder %s69, %s70
      %p79 = scmp.eq.s32.totalorder %s17, 0
      %p80 = por %p78, %p79
      %p81 = scmp.ne.s32.totalorder %s69, %s70
      %p82 = scmp.eq.s32.totalorder %s18, 1
      %p83 = por %p81, %p82
      %p85 = scmp.ne.s32.totalorder %s70, %s84
      %p86 = scmp.eq.s32.totalorder %s18, 0
      %p87 = por %p85, %p86
      %s89 = sadd.s32 %s88, 1
      %p92 = scmp.eq.s32.totalorder %s12, 1
      %p93 = scmp.ne.s32.totalorder %s88, %s90
      %p94 = scmp.eq.s32.totalorder %s12, 0
      %p95 = por %p93, %p94
      %p96 = scmp.ne.s32.totalorder %s88, %s90
      %p97 = scmp.eq.s32.totalorder %s17, 1
      %p98 = por %p96, %p97
      %p99 = scmp.ne.s32.totalorder %s90, %s91
      %p100 = scmp.eq.s32.totalorder %s17, 0
      %p101 = por %p99, %p100
      %p102 = scmp.ne.s32.totalorder %s90, %s91
      %p103 = scmp.eq.s32.totalorder %s18, 1
      %p104 = por %p102, %p103
      %p106 = scmp.ne.s32.totalorder %s91, %s105
      %p107 = scmp.eq.s32.totalorder %s18, 0
      %p108 = por %p106, %p107
      %s110 = sadd.s32 %s109, 1
      %p113 = scmp.eq.s32.totalorder %s12, 1
      %p114 = scmp.ne.s32.totalorder %s109, %s111
      %p115 = scmp.eq.s32.totalorder %s12, 0
      %p116 = por %p114, %p115
      %p117 = scmp.ne.s32.totalorder %s109, %s111
      %p118 = scmp.eq.s32.totalorder %s17, 1
      %p119 = por %p117, %p118
      %p120 = scmp.ne.s32.totalorder %s111, %s112
      %p121 = scmp.eq.s32.totalorder %s17, 0
      %p122 = por %p120, %p121
      %p123 = scmp.ne.s32.totalorder %s111, %s112
      %p124 = scmp.eq.s32.totalorder %s18, 1
      %p125 = por %p123, %p124
      %p127 = scmp.ne.s32.totalorder %s112, %s126
      %p128 = scmp.eq.s32.totalorder %s18, 0
      %p129 = por %p127, %p128
      %s130 = ssub.s32 %s12, %s19
      %p131 = scmp.eq.s32.totalorder %s130, 0
      %s133 = sadd.s32 %s132, 1
      %s134 = scalar_select %p131, %s132, %s133
      %p137 = pneg %p131
      %p138 = scmp.eq.s32.totalorder %s12, 1
      %p139 = por %p137, %p138
      %p140 = scmp.ne.s32.totalorder %s132, %s135
      %p141 = scmp.eq.s32.totalorder %s12, 0
      %p142 = por %p140, %p141
      %p143 = scmp.ne.s32.totalorder %s132, %s135
      %p144 = scmp.eq.s32.totalorder %s17, 1
      %p145 = por %p143, %p144
      %p146 = scmp.ne.s32.totalorder %s135, %s136
      %p147 = scmp.eq.s32.totalorder %s17, 0
      %p148 = por %p146, %p147
      %p149 = scmp.ne.s32.totalorder %s135, %s136
      %p150 = scmp.eq.s32.totalorder %s18, 1
      %p151 = por %p149, %p150
      %p153 = scmp.ne.s32.totalorder %s136, %s152
      %p154 = scmp.eq.s32.totalorder %s18, 0
      %p155 = por %p153, %p154
      %p156 = scmp.le.s32.totalorder 1, %s12
      %p157 = scmp.lt.s32.totalorder %s12, 3
      %p158 = pnand %p156, %p157
      %p159 = pneg %p158
      // Predicated region
      $region9: #{_forward.1} parent=5 // pred_check
        _
      $region10: #{_forward.1} parent=5 // pred_check_branch
        %161 = sbr.rel (%p158) target = $region12
      $region11: #{_forward.1} parent=5 // pred_region
        %s162 = ssub.s32 %s12, 1
        // Predicated region
        $region13: #{_forward.1} parent=11 // pred_check
          %p163 = pneg %p59
        $region14: #{_forward.1} parent=11 // pred_check_branch
          %165 = sbr.rel (%p163) target = $region16
        $region15: #{_forward.1} parent=11 // pred_region
          _
        $region16: #{_forward.1} parent=11 // pred_fallthru
          _
        // Predicated region
        $region17: #{_forward.1} parent=11 // pred_check
          %p166 = pneg %p80
        $region18: #{_forward.1} parent=11 // pred_check_branch
          %168 = sbr.rel (%p166) target = $region20
        $region19: #{_forward.1} parent=11 // pred_region
          _
        $region20: #{_forward.1} parent=11 // pred_fallthru
          _
        // Predicated region
        $region21: #{_forward.1} parent=11 // pred_check
          %p169 = pneg %p101
        $region22: #{_forward.1} parent=11 // pred_check_branch
          %171 = sbr.rel (%p169) target = $region24
        $region23: #{_forward.1} parent=11 // pred_region
          %s173 = ssub.s32 1024, 1024
          %174 = vsyncadd [#allocation3], %s173
          %s175 = sshll.u32 [#allocation2], 4
          %s176 = int_to_ptr.vmem [resolvable:$true] %s175
          %181 = dma.hbm_to_vmem [thread:$0]  %s3, 1024, %s176, [#allocation3], 64, 64, 4
        $region24: #{_forward.1} parent=11 // pred_fallthru
          _
        // Predicated region
        $region25: #{_forward.1} parent=11 // pred_check
          %p182 = pneg %p122
        $region26: #{_forward.1} parent=11 // pred_check_branch
          %184 = sbr.rel (%p182) target = $region28
        $region27: #{_forward.1} parent=11 // pred_region
          _
        $region28: #{_forward.1} parent=11 // pred_fallthru
          _
      $region12: #{_forward.1} parent=5 // pred_fallthru
        _
      %p185 = scmp.lt.s32.totalorder %s12, 2
      // Predicated region
      $region29: #{_forward.1} parent=5 // pred_check
        %p186 = pneg %p185
      $region30: #{_forward.1} parent=5 // pred_check_branch
        %188 = sbr.rel (%p186) target = $region32
      $region31: #{_forward.1} parent=5 // pred_region
        // Predicated region
        $region33: #{_forward.1} parent=31 // pred_check
          %p189 = pneg %p32
        $region34: #{_forward.1} parent=31 // pred_check_branch
          %191 = sbr.rel (%p189) target = $region36
        $region35: #{_forward.1} parent=31 // pred_region
          %s192 = smul.u32 2, %s12
          %p193 = scmp.lt.s32.totalorder %s192, 3
          %s194 = scalar_select %p193, %s192, 3
          %s195 = smul.addr %s194, 8
          %s196 = scalar_lea.vmem %s0, %s195
          %s197 = smul.u32 2, %s12
        $region36: #{_forward.1} parent=31 // pred_fallthru
          _
      $region32: #{_forward.1} parent=5 // pred_fallthru
        _
      %p198 = scmp.le.s32.totalorder 1, %s12
      %p199 = scmp.lt.s32.totalorder %s12, 3
      %p200 = pnand %p198, %p199
      %p201 = pneg %p200
      // Predicated region
      $region37: #{_forward.1} parent=5 // pred_check
        _
      $region38: #{_forward.1} parent=5 // pred_check_branch
        %203 = sbr.rel (%p200) target = $region40
      $region39: #{_forward.1} parent=5 // pred_region
        %s204 = ssub.s32 %s12, 1
        // Predicated region
        $region41: #{_forward.1} parent=39 // pred_check
          %p205 = pneg %p101
        $region42: #{_forward.1} parent=39 // pred_check_branch
          %207 = sbr.rel (%p205) target = $region44
        $region43: #{_forward.1} parent=39 // pred_region
          %208 = dma.done [#allocation3], 1024
        $region44: #{_forward.1} parent=39 // pred_fallthru
          _
        %s209 = smul.u32 2, %s17
        %p210 = scmp.lt.s32.totalorder %s209, 3
        %s211 = scalar_select %p210, %s209, 3
        %s212 = smul.addr %s211, 8
        %s213 = scalar_lea.vmem %s0, %s212
        %p214 = pneg %p38
        %p215 = pneg %p35
        %p216 = pneg %p59
        %p217 = pneg %p56
        %p218 = pneg %p80
        %p219 = pneg %p77
        %p220 = pneg %p101
        %p221 = pneg %p98
        %p222 = pneg %p122
        %p223 = pneg %p119
        %p224 = pneg %p148
        %p225 = pneg %p145
        %s226 = smul.u32 2, %s17
        %p227 = scmp.lt.s32.totalorder %s226, 3
        %s228 = scalar_select %p227, %s226, 3
        %s229 = smul.addr %s228, 8
        %s230 = scalar_lea.vmem %s5, %s229
        %s231 = smul.u32 2, %s17
        %p232 = scmp.lt.s32.totalorder %s231, 3
        %s233 = scalar_select %p232, %s231, 3
        %s234 = smul.addr %s233, 8
        %s235 = scalar_lea.vmem %s0, %s234
        %s236 = smul.u32 2, %s17
        %s237 = smul.u32 2, %s17
        %p238 = scmp.lt.s32.totalorder %s237, 3
        %s239 = scalar_select %p238, %s237, 3
        %s240 = smul.addr %s239, 8
        %s241 = scalar_lea.vmem %s5, %s240
        %s242 = smul.u32 2, %s17
        %v244 = vld [vmem:[%s1] sm:$0xf]
        %v245 = vld [vmem:[%s1 + $0x4] sm:$0xf]
        %v246 = vld [vmem:[%s1 + $0x8] sm:$0xf]
        %v247 = vld [vmem:[%s1 + $0xc] sm:$0xf]
        %v248 = vld [vmem:[%s1 + $0x10] sm:$0xf]
        %v249 = vld [vmem:[%s1 + $0x14] sm:$0xf]
        %v250 = vld [vmem:[%s1 + $0x18] sm:$0xf]
        %v251 = vld [vmem:[%s1 + $0x1c] sm:$0xf]
        %v252 = vld [vmem:[%s1 + $0x20] sm:$0xf]
        %v253 = vld [vmem:[%s1 + $0x24] sm:$0xf]
        %v254 = vld [vmem:[%s1 + $0x28] sm:$0xf]
        %v255 = vld [vmem:[%s1 + $0x2c] sm:$0xf]
        %v256 = vld [vmem:[%s1 + $0x30] sm:$0xf]
        %v257 = vld [vmem:[%s1 + $0x34] sm:$0xf]
        %v258 = vld [vmem:[%s1 + $0x38] sm:$0xf]
        %v259 = vld [vmem:[%s1 + $0x3c] sm:$0xf]
        %v260 = vld [vmem:[#allocation2] sm:$0xf]
        %v261 = vld [vmem:[#allocation2 + $0x4] sm:$0xf]
        %v262 = vld [vmem:[#allocation2 + $0x8] sm:$0xf]
        %v263 = vld [vmem:[#allocation2 + $0xc] sm:$0xf]
        %v264 = vld [vmem:[#allocation2 + $0x10] sm:$0xf]
        %v265 = vld [vmem:[#allocation2 + $0x14] sm:$0xf]
        %v266 = vld [vmem:[#allocation2 + $0x18] sm:$0xf]
        %v267 = vld [vmem:[#allocation2 + $0x1c] sm:$0xf]
        %v268 = vld [vmem:[#allocation2 + $0x20] sm:$0xf]
        %v269 = vld [vmem:[#allocation2 + $0x24] sm:$0xf]
        %v270 = vld [vmem:[#allocation2 + $0x28] sm:$0xf]
        %v271 = vld [vmem:[#allocation2 + $0x2c] sm:$0xf]
        %v272 = vld [vmem:[#allocation2 + $0x30] sm:$0xf]
        %v273 = vld [vmem:[#allocation2 + $0x34] sm:$0xf]
        %v274 = vld [vmem:[#allocation2 + $0x38] sm:$0xf]
        %v275 = vld [vmem:[#allocation2 + $0x3c] sm:$0xf]
        %v276 = vld [vmem:[%s2] sm:$0x1]
        %v278 = vlaneseq
        %v279 = vshrl.u32 %v278, 7
        %v280 = vsub.s32 0, %v279
        %v281 = vrot.slane %v276, %v280
        %v283 = vld [vmem:[%s4] sm:$0x1]
        %v285 = vlaneseq
        %v286 = vshrl.u32 %v285, 7
        %v287 = vsub.s32 0, %v286
        %v288 = vrot.slane %v283, %v287
        %v290 = vld [vmem:[%s235] sm:$0xff]
        %v291 = vld [vmem:[%s235 + $0x8] sm:$0xff]
        %v292 = vpack.c.bf16 %v291, %v290
        %v309 = vunpack.c.l.b16 %v244
        %v310 = vunpack.c.l.b16 %v245
        %v311 = vunpack.c.l.b16 %v246
        %v312 = vunpack.c.l.b16 %v247
        %v313 = vunpack.c.l.b16 %v248
        %v314 = vunpack.c.l.b16 %v249
        %v315 = vunpack.c.l.b16 %v250
        %v316 = vunpack.c.l.b16 %v251
        %v317 = vunpack.c.l.b16 %v252
        %v318 = vunpack.c.l.b16 %v253
        %v319 = vunpack.c.l.b16 %v254
        %v320 = vunpack.c.l.b16 %v255
        %v321 = vunpack.c.l.b16 %v256
        %v322 = vunpack.c.l.b16 %v257
        %v323 = vunpack.c.l.b16 %v258
        %v324 = vunpack.c.l.b16 %v259
        %v325 = vpack.c.b16 %v310, %v309
        %v326 = vpack.c.b16 %v312, %v311
        %v327 = vpack.c.b16 %v314, %v313
        %v328 = vpack.c.b16 %v316, %v315
        %v329 = vpack.c.b16 %v318, %v317
        %v330 = vpack.c.b16 %v320, %v319
        %v331 = vpack.c.b16 %v322, %v321
        %v332 = vpack.c.b16 %v324, %v323
        %341 = vmatprep.subr.bf16.mxu0 0
        %342 = vmatpush1.bf16.msra.mxu0 %v325
        %343 = vmatprep.subr.bf16.mxu0 0
        %344 = vmatpush1.bf16.msra.mxu0 %v326
        %345 = vmatprep.subr.bf16.mxu0 0
        %346 = vmatpush1.bf16.msra.mxu0 %v327
        %347 = vmatprep.subr.bf16.mxu0 0
        %348 = vmatpush1.bf16.msra.mxu0 %v328
        %349 = vmatprep.subr.bf16.mxu0 0
        %350 = vmatpush1.bf16.msra.mxu0 %v329
        %351 = vmatprep.subr.bf16.mxu0 0
        %352 = vmatpush1.bf16.msra.mxu0 %v330
        %353 = vmatprep.subr.bf16.mxu0 0
        %354 = vmatpush1.bf16.msra.mxu0 %v331
        %355 = vmatprep.subr.bf16.mxu0 0
        %356 = vmatpush1.bf16.msra.mxu0 %v332
        %357 = vmatprep.subr.bf16.mxu0 0
        %358 = vmatpush1.bf16.msra.mxu0 0
        %359 = vmatprep.subr.bf16.mxu0 0
        %360 = vmatpush1.bf16.msra.mxu0 0
        %361 = vmatprep.subr.bf16.mxu0 0
        %362 = vmatpush1.bf16.msra.mxu0 0
        %363 = vmatprep.subr.bf16.mxu0 0
        %364 = vmatpush1.bf16.msra.mxu0 0
        %365 = vmatprep.subr.bf16.mxu0 0
        %366 = vmatpush1.bf16.msra.mxu0 0
        %367 = vmatprep.subr.bf16.mxu0 0
        %368 = vmatpush1.bf16.msra.mxu0 0
        %369 = vmatprep.subr.bf16.mxu0 0
        %370 = vmatpush1.bf16.msra.mxu0 0
        %371 = vmatprep.subr.bf16.mxu0 0
        %372 = vmatpush1.bf16.msra.mxu0 0
        %373 = vmatprep.mubr.bf16.mxu0 0
        %374 = vmatmul.mubr.bf16.gmra.mrb[0].mxu0 %v292
        %v375 = vpop.f32.mrb[0].mxu0
        %v376 = vadd.f32 %v281, %v375
        %v377 = vpop.f32.mrb[0].mxu0
        %v378 = vpop.f32.mrb[0].mxu0
        %v379 = vadd.f32 %v281, %v378
        %v380 = vpop.f32.mrb[0].mxu0
        %381 = vdwg.mxu0
        %v382 = vmax.f32 %v376, 0.0
        %v383 = vmax.f32 %v379, 0.0
        %v384 = vmul.f32 %v382, %v382
        %v385 = vmul.f32 %v383, %v383
        %v386 = vmul.f32 %v384, %v382
        %v387 = vmul.f32 %v385, %v383
        %v388 = vpack.c.bf16 %v387, %v386
        %v405 = vunpack.c.l.b16 %v260
        %v406 = vunpack.c.l.b16 %v261
        %v407 = vunpack.c.l.b16 %v262
        %v408 = vunpack.c.l.b16 %v263
        %v409 = vunpack.c.l.b16 %v264
        %v410 = vunpack.c.l.b16 %v265
        %v411 = vunpack.c.l.b16 %v266
        %v412 = vunpack.c.l.b16 %v267
        %v413 = vunpack.c.l.b16 %v268
        %v414 = vunpack.c.l.b16 %v269
        %v415 = vunpack.c.l.b16 %v270
        %v416 = vunpack.c.l.b16 %v271
        %v417 = vunpack.c.l.b16 %v272
        %v418 = vunpack.c.l.b16 %v273
        %v419 = vunpack.c.l.b16 %v274
        %v420 = vunpack.c.l.b16 %v275
        %v421 = vpack.c.b16 %v406, %v405
        %v422 = vpack.c.b16 %v408, %v407
        %v423 = vpack.c.b16 %v410, %v409
        %v424 = vpack.c.b16 %v412, %v411
        %v425 = vpack.c.b16 %v414, %v413
        %v426 = vpack.c.b16 %v416, %v415
        %v427 = vpack.c.b16 %v418, %v417
        %v428 = vpack.c.b16 %v420, %v419
        %437 = vmatprep.subr.bf16.mxu0 0
        %438 = vmatpush1.bf16.msra.mxu0 %v421
        %439 = vmatprep.subr.bf16.mxu0 0
        %440 = vmatpush1.bf16.msra.mxu0 %v422
        %441 = vmatprep.subr.bf16.mxu0 0
        %442 = vmatpush1.bf16.msra.mxu0 %v423
        %443 = vmatprep.subr.bf16.mxu0 0
        %444 = vmatpush1.bf16.msra.mxu0 %v424
        %445 = vmatprep.subr.bf16.mxu0 0
        %446 = vmatpush1.bf16.msra.mxu0 %v425
        %447 = vmatprep.subr.bf16.mxu0 0
        %448 = vmatpush1.bf16.msra.mxu0 %v426
        %449 = vmatprep.subr.bf16.mxu0 0
        %450 = vmatpush1.bf16.msra.mxu0 %v427
        %451 = vmatprep.subr.bf16.mxu0 0
        %452 = vmatpush1.bf16.msra.mxu0 %v428
        %453 = vmatprep.subr.bf16.mxu0 0
        %454 = vmatpush1.bf16.msra.mxu0 0
        %455 = vmatprep.subr.bf16.mxu0 0
        %456 = vmatpush1.bf16.msra.mxu0 0
        %457 = vmatprep.subr.bf16.mxu0 0
        %458 = vmatpush1.bf16.msra.mxu0 0
        %459 = vmatprep.subr.bf16.mxu0 0
        %460 = vmatpush1.bf16.msra.mxu0 0
        %461 = vmatprep.subr.bf16.mxu0 0
        %462 = vmatpush1.bf16.msra.mxu0 0
        %463 = vmatprep.subr.bf16.mxu0 0
        %464 = vmatpush1.bf16.msra.mxu0 0
        %465 = vmatprep.subr.bf16.mxu0 0
        %466 = vmatpush1.bf16.msra.mxu0 0
        %467 = vmatprep.subr.bf16.mxu0 0
        %468 = vmatpush1.bf16.msra.mxu0 0
        %469 = vmatprep.mubr.bf16.mxu0 0
        %470 = vmatmul.mubr.bf16.gmra.mrb[0].mxu0 %v388
        %v471 = vpop.f32.mrb[0].mxu0
        %v472 = vadd.f32 %v288, %v471
        %v473 = vpop.f32.mrb[0].mxu0
        %v474 = vpop.f32.mrb[0].mxu0
        %v475 = vadd.f32 %v288, %v474
        %v476 = vpop.f32.mrb[0].mxu0
        %477 = vdwg.mxu0
        %v478 = vmax.f32 %v472, 0.0
        %v479 = vmax.f32 %v475, 0.0
        %v480 = vmul.f32 %v478, %v478
        %v481 = vmul.f32 %v479, %v479
        %v482 = vmul.f32 %v480, %v478
        %v483 = vmul.f32 %v481, %v479
        %v484 = vadd.f32 %v482, %v290
        %v485 = vadd.f32 %v483, %v291
        %486 = vst [vmem:[%s241] sm:$0xff] %v484
        %487 = vst [vmem:[%s241 + $0x8] sm:$0xff] %v485
        %s488 = smul.u32 2, %s17
        %p489 = scmp.lt.s32.totalorder %s488, 3
        %s490 = scalar_select %p489, %s488, 3
        %s491 = smul.addr %s490, 8
        %s492 = scalar_lea.vmem %s5, %s491
        // Predicated region
        $region45: #{_forward.1} parent=39 // pred_check
          %p493 = pneg %p145
        $region46: #{_forward.1} parent=39 // pred_check_branch
          %495 = sbr.rel (%p493) target = $region48
        $region47: #{_forward.1} parent=39 // pred_region
          %s496 = smul.u32 2, %s17
        $region48: #{_forward.1} parent=39 // pred_fallthru
          _
      $region40: #{_forward.1} parent=5 // pred_fallthru
        _
      %p497 = scmp.le.s32.totalorder 2, %s12
      // Predicated region
      $region49: #{_forward.1} parent=5 // pred_check
        %p498 = pneg %p497
      $region50: #{_forward.1} parent=5 // pred_check_branch
        %500 = sbr.rel (%p498) target = $region52
      $region51: #{_forward.1} parent=5 // pred_region
        %s501 = ssub.s32 %s12, 2
        // Predicated region
        $region53: #{_forward.1} parent=51 // pred_check
          %p502 = pneg %p151
        $region54: #{_forward.1} parent=51 // pred_check_branch
          %504 = sbr.rel (%p502) target = $region56
        $region55: #{_forward.1} parent=51 // pred_region
          %s505 = smul.u32 2, %s18
          %p506 = scmp.lt.s32.totalorder %s505, 3
          %s507 = scalar_select %p506, %s505, 3
          %s508 = smul.addr %s507, 8
          %s509 = scalar_lea.vmem %s5, %s508
        $region56: #{_forward.1} parent=51 // pred_fallthru
          _
      $region52: #{_forward.1} parent=5 // pred_fallthru
        _
    $region6: #{_forward.1} parent=1 // loop_footer
      %s16 = sadd.s32 1, %s12
    $region7: #{_forward.1} parent=1 // loop_footer_branch
      %11 = sbr.rel target = $region3
    $region8: #{_forward.1} parent=1 // loop_exit
      _
    %510 = vsyncpa [#allocation3], 1
    %s511 = scalar_lea.sflag [#allocation3], 1
    %512 = vsyncpa %s511, 1

</llo_original>
